<compile_context>
chip_gen: v7x
topology: tpu7x:2x2x1
jax: 0.10.0
libtpu: 0.0.40
codegen_flags: <defaults>
</compile_context>

<pallas_src>
import functools

import jax
import jax.numpy as jnp
from jax.experimental import pallas as pl
from jax.experimental.pallas import tpu as pltpu


def wpi_kernel(feat_ref, tgt_ref, wa_ref, wh_ref, b_ref, eps_ref, o_ref):
    """Fused encoder + sampling.

    feat_ref : (B, F)        f32  input features
    tgt_ref  : (B, 1)        i32  class labels
    wa_ref   : (F+O+H, H)    bf16 packed [W1_feat.T ; cls_emb@W1_emb.T + b1 ; W2.T]
    wh_ref   : (H, 2*O)      bf16 fused [W_mean.T | W_var.T]
    b_ref    : (1, H+2*O)    f32  packed [b2 | b_mean | b_var]
    eps_ref  : (S, B, O)     f32  standard-normal noise (torch.randn_like equivalent)
    o_ref    : (S, B, O)     f32  sigmoid(mean + std * eps)
    """
    F = feat_ref.shape[1]
    H = wa_ref.shape[1]
    O = wh_ref.shape[1] // 2
    B = feat_ref.shape[0]

    feat = feat_ref[...].astype(jnp.bfloat16)            # (B, F)
    tgt = tgt_ref[...]                                   # (B, 1) int32

    # Embedding lookup fused into linear1: one_hot(target) @ (cls_emb @ W1_emb.T + b1).
    onehot = (jax.lax.broadcasted_iota(jnp.int32, (B, O), 1) == tgt).astype(jnp.bfloat16)

    w1f = wa_ref[0:F, :]          # (F, H)
    w1e = wa_ref[F:F + O, :]      # (O, H)  rows already include b1
    w2 = wa_ref[F + O:, :]        # (H, H)

    h1 = jnp.tanh(
        jnp.dot(feat, w1f, preferred_element_type=jnp.float32)
        + jnp.dot(onehot, w1e, preferred_element_type=jnp.float32))

    b_all = b_ref[...]            # (1, H + 2*O)
    b2 = b_all[:, :H]
    bh = b_all[:, H:]

    h2 = jnp.tanh(
        jnp.dot(h1.astype(jnp.bfloat16), w2, preferred_element_type=jnp.float32) + b2)

    # Fused mean / log_var head: one matmul, split with static slices.
    head = jnp.dot(h2.astype(jnp.bfloat16), wh_ref[...],
                   preferred_element_type=jnp.float32) + bh      # (B, 2*O)
    mean = head[:, :O]
    std = jnp.exp(0.5 * head[:, O:])

    # Reparameterized sampling + sigmoid, broadcast over the sample axis.
    # TODO(synk): at large sample_num, generate eps on-chip (pltpu.prng_seed +
    # pltpu.stateful_normal) and/or loop over S instead of materializing (S,B,O) at once.
    o_ref[...] = jax.nn.sigmoid(mean[None, :, :] + std[None, :, :] * eps_ref[...])


def prepare_params(params):
    """One-time packing (NOT on the per-call path): transpose, fuse, fold, cast."""
    O = params["cls_emb"].shape[1]
    feat_dim = params["w1"].shape[1] - O

    w1_feat_t = params["w1"][:, :feat_dim].T                       # (F, H)
    w1_emb_t = params["w1"][:, feat_dim:].T                        # (O, H)
    emb_w1b = params["cls_emb"] @ w1_emb_t + params["b1"][None, :]  # (O, H), b1 folded in

    wa = jnp.concatenate([w1_feat_t, emb_w1b, params["w2"].T],
                         axis=0).astype(jnp.bfloat16)              # (F+O+H, H)
    wh = jnp.concatenate([params["wm"].T, params["wv"].T],
                         axis=1).astype(jnp.bfloat16)              # (H, 2*O)
    b_all = jnp.concatenate([params["b2"], params["bm"], params["bv"]]
                            )[None, :].astype(jnp.float32)         # (1, H+2*O)
    return dict(wa=wa, wh=wh, b_all=b_all)


@functools.partial(jax.jit, static_argnames=("sample_num",))
def wpi_forward(feat, target, sample_num, prep, eps):
    """Equivalent of wpi.forward(feat, target, sample_num) with eps supplied."""
    B = feat.shape[0]
    O = prep["wh"].shape[1] // 2
    tgt2d = target.astype(jnp.int32).reshape(B, 1)

    vmem = pl.BlockSpec(memory_space=pltpu.MemorySpace.VMEM)
    return pl.pallas_call(
        wpi_kernel,
        out_shape=jax.ShapeDtypeStruct((sample_num, B, O), jnp.float32),
        in_specs=[vmem] * 6,
        out_specs=vmem,
    )(feat, tgt2d, prep["wa"], prep["wh"], prep["b_all"], eps)


def wpi_reference(feat, target, params, eps):
    """Pure-JAX f32 reference matching the PyTorch forward."""
    emb = params["cls_emb"][target]
    x = jnp.concatenate([feat, emb], axis=-1)
    h1 = jnp.tanh(x @ params["w1"].T + params["b1"])
    h2 = jnp.tanh(h1 @ params["w2"].T + params["b2"])
    mean = h2 @ params["wm"].T + params["bm"]
    log_var = h2 @ params["wv"].T + params["bv"]
    std = jnp.exp(0.5 * log_var)
    return jax.nn.sigmoid(mean[None] + std[None] * eps)


def xavier_normal(key, out_dim, in_dim):
    std = (2.0 / (in_dim + out_dim)) ** 0.5
    return std * jax.random.normal(key, (out_dim, in_dim), jnp.float32)


if __name__ == "__main__":
    key = jax.random.PRNGKey(0)
    B, feat_dim, hidden1, output, sample_num = 8, 24, 32, 8, 4
    input_dim = feat_dim + output                      # wpi(input, hidden1, output)

    keys = jax.random.split(key, 8)
    params = dict(
        # PyTorch nn.Linear convention: weight stored as (out, in).
        w1=xavier_normal(keys[0], hidden1, input_dim),
        b1=jnp.zeros((hidden1,), jnp.float32),
        w2=xavier_normal(keys[1], hidden1, hidden1),
        b2=jnp.zeros((hidden1,), jnp.float32),
        wm=xavier_normal(keys[2], output, hidden1),
        bm=jnp.zeros((output,), jnp.float32),
        # TODO(synk): PyTorch leaves linear_var at nn.Linear's default kaiming-uniform
        # init; deterministic xavier-normal is used here for this synthetic kernel.
        wv=xavier_normal(keys[3], output, hidden1),
        bv=jnp.zeros((output,), jnp.float32),
        cls_emb=jax.random.normal(keys[4], (output, output), jnp.float32),  # N(0,1)
    )
    prep = prepare_params(params)                      # one-time packing, off the hot path

    feat = jax.random.normal(keys[5], (B, feat_dim), jnp.float32)
    target = jax.random.randint(keys[6], (B,), 0, output)
    # eps plays the role of torch.randn_like(std.unsqueeze(0).repeat(sample_num,1,1)).
    eps = jax.random.normal(keys[7], (sample_num, B, output), jnp.float32)

    out = wpi_forward(feat, target, sample_num, prep, eps)
    jax.block_until_ready(out)

    ref = wpi_reference(feat, target, params, eps)
    assert out.shape == (sample_num, B, output)
    assert bool(jnp.all(jnp.isfinite(out)))
    assert bool(jnp.all((out >= 0.0) & (out <= 1.0)))
    assert float(jnp.max(jnp.abs(out - ref))) < 3e-2   # bf16-matmul tolerance
    print("KERNEL_OK")
</pallas_src>

<mosaic_0001>
module attributes {stable_mosaic.version = 11 : i64} {
  func.func @wpi_kernel(%arg0: memref<8x24xf32, #tpu.memory_space<vmem>>, %arg1: memref<8x1xi32, #tpu.memory_space<vmem>>, %arg2: memref<64x32xbf16, #tpu.memory_space<vmem>>, %arg3: memref<32x16xbf16, #tpu.memory_space<vmem>>, %arg4: memref<1x48xf32, #tpu.memory_space<vmem>>, %arg5: memref<4x8x8xf32, #tpu.memory_space<vmem>>, %arg6: memref<4x8x8xf32, #tpu.memory_space<vmem>>) attributes {dimension_semantics = [], scalar_prefetch = 0 : i64, scratch_operands = 0 : i64, tpu.core_type = #tpu.core_type<tc>} {
    %c0 = arith.constant 0 : index
    %c0_0 = arith.constant 0 : index
    %0 = vector.load %arg0[%c0, %c0_0] : memref<8x24xf32, #tpu.memory_space<vmem>>, vector<8x24xf32>
    %1 = arith.truncf %0 : vector<8x24xf32> to vector<8x24xbf16>
    %c0_1 = arith.constant 0 : index
    %c0_2 = arith.constant 0 : index
    %2 = vector.load %arg1[%c0_1, %c0_2] : memref<8x1xi32, #tpu.memory_space<vmem>>, vector<8x1xi32>
    %3 = tpu.iota {dimensions = array<i32: 1>} : vector<8x8xi32>
    %4 = vector.broadcast %2 : vector<8x1xi32> to vector<8x8xi32>
    %5 = arith.cmpi eq, %3, %4 : vector<8x8xi32>
    %6 = arith.extui %5 : vector<8x8xi1> to vector<8x8xi32>
    %7 = arith.sitofp %6 : vector<8x8xi32> to vector<8x8xf32>
    %8 = arith.truncf %7 : vector<8x8xf32> to vector<8x8xbf16>
    %c0_3 = arith.constant 0 : index
    %c0_4 = arith.constant 0 : index
    %9 = vector.load %arg2[%c0_3, %c0_4] : memref<64x32xbf16, #tpu.memory_space<vmem>>, vector<24x32xbf16>
    %c24 = arith.constant 24 : index
    %c0_5 = arith.constant 0 : index
    %10 = vector.load %arg2[%c24, %c0_5] : memref<64x32xbf16, #tpu.memory_space<vmem>>, vector<8x32xbf16>
    %c32 = arith.constant 32 : index
    %c0_6 = arith.constant 0 : index
    %11 = vector.load %arg2[%c32, %c0_6] : memref<64x32xbf16, #tpu.memory_space<vmem>>, vector<32x32xbf16>
    %cst = arith.constant dense<0.000000e+00> : vector<8x32xf32>
    %12 = tpu.matmul %1, %9, %cst {dimension_numbers = #tpu.dot_dimension_numbers<[1], [0], [0], [1], [0, 0, 1, 1], [], []>} : vector<8x24xbf16>, vector<24x32xbf16>, vector<8x32xf32> -> vector<8x32xf32>
    %cst_7 = arith.constant dense<0.000000e+00> : vector<8x32xf32>
    %13 = tpu.matmul %8, %10, %cst_7 {dimension_numbers = #tpu.dot_dimension_numbers<[1], [0], [0], [1], [0, 0, 1, 1], [], []>} : vector<8x8xbf16>, vector<8x32xbf16>, vector<8x32xf32> -> vector<8x32xf32>
    %14 = arith.addf %12, %13 : vector<8x32xf32>
    %15 = math.tanh %14 : vector<8x32xf32>
    %c0_8 = arith.constant 0 : index
    %c0_9 = arith.constant 0 : index
    %16 = vector.load %arg4[%c0_8, %c0_9] : memref<1x48xf32, #tpu.memory_space<vmem>>, vector<1x48xf32>
    %17 = vector.extract_strided_slice %16 {offsets = [0, 0], sizes = [1, 32], strides = [1, 1]} : vector<1x48xf32> to vector<1x32xf32>
    %18 = vector.extract_strided_slice %16 {offsets = [0, 32], sizes = [1, 16], strides = [1, 1]} : vector<1x48xf32> to vector<1x16xf32>
    %19 = arith.truncf %15 : vector<8x32xf32> to vector<8x32xbf16>
    %cst_10 = arith.constant dense<0.000000e+00> : vector<8x32xf32>
    %20 = tpu.matmul %19, %11, %cst_10 {dimension_numbers = #tpu.dot_dimension_numbers<[1], [0], [0], [1], [0, 0, 1, 1], [], []>} : vector<8x32xbf16>, vector<32x32xbf16>, vector<8x32xf32> -> vector<8x32xf32>
    %21 = vector.broadcast %17 : vector<1x32xf32> to vector<8x32xf32>
    %22 = arith.addf %20, %21 : vector<8x32xf32>
    %23 = math.tanh %22 : vector<8x32xf32>
    %24 = arith.truncf %23 : vector<8x32xf32> to vector<8x32xbf16>
    %c0_11 = arith.constant 0 : index
    %c0_12 = arith.constant 0 : index
    %25 = vector.load %arg3[%c0_11, %c0_12] : memref<32x16xbf16, #tpu.memory_space<vmem>>, vector<32x16xbf16>
    %cst_13 = arith.constant dense<0.000000e+00> : vector<8x16xf32>
    %26 = tpu.matmul %24, %25, %cst_13 {dimension_numbers = #tpu.dot_dimension_numbers<[1], [0], [0], [1], [0, 0, 1, 1], [], []>} : vector<8x32xbf16>, vector<32x16xbf16>, vector<8x16xf32> -> vector<8x16xf32>
    %27 = vector.broadcast %18 : vector<1x16xf32> to vector<8x16xf32>
    %28 = arith.addf %26, %27 : vector<8x16xf32>
    %29 = vector.extract_strided_slice %28 {offsets = [0, 0], sizes = [8, 8], strides = [1, 1]} : vector<8x16xf32> to vector<8x8xf32>
    %30 = vector.extract_strided_slice %28 {offsets = [0, 8], sizes = [8, 8], strides = [1, 1]} : vector<8x16xf32> to vector<8x8xf32>
    %cst_14 = arith.constant 5.000000e-01 : f32
    %31 = vector.broadcast %cst_14 : f32 to vector<8x8xf32>
    %32 = arith.mulf %31, %30 : vector<8x8xf32>
    %33 = math.exp %32 : vector<8x8xf32>
    %34 = vector.shape_cast %29 : vector<8x8xf32> to vector<1x8x8xf32>
    %35 = vector.shape_cast %33 : vector<8x8xf32> to vector<1x8x8xf32>
    %c0_15 = arith.constant 0 : index
    %c0_16 = arith.constant 0 : index
    %c0_17 = arith.constant 0 : index
    %36 = vector.load %arg5[%c0_15, %c0_16, %c0_17] : memref<4x8x8xf32, #tpu.memory_space<vmem>>, vector<4x8x8xf32>
    %37 = vector.broadcast %35 : vector<1x8x8xf32> to vector<4x8x8xf32>
    %38 = arith.mulf %37, %36 : vector<4x8x8xf32>
    %39 = vector.broadcast %34 : vector<1x8x8xf32> to vector<4x8x8xf32>
    %40 = arith.addf %39, %38 : vector<4x8x8xf32>
    %41 = arith.negf %40 : vector<4x8x8xf32>
    %42 = math.exp %41 : vector<4x8x8xf32>
    %cst_18 = arith.constant 1.000000e+00 : f32
    %43 = vector.broadcast %cst_18 : f32 to vector<4x8x8xf32>
    %44 = arith.addf %43, %42 : vector<4x8x8xf32>
    %45 = arith.divf %43, %44 : vector<4x8x8xf32>
    %c0_19 = arith.constant 0 : index
    %c0_20 = arith.constant 0 : index
    %c0_21 = arith.constant 0 : index
    %46 = vector.load %arg6[%c0_19, %c0_20, %c0_21] : memref<4x8x8xf32, #tpu.memory_space<vmem>>, vector<4x8x8xf32>
    tpu.vector_store %arg6[%c0_19, %c0_20, %c0_21], %45 {strides = array<i32>} : memref<4x8x8xf32, #tpu.memory_space<vmem>>, vector<4x8x8xf32>,
    return
  }
}

</mosaic_0001>

<llo_original>
// kernel: wpi_forward.1
$region0: #{wpi_forward.1}
  #allocation0 [shape = 'u32[]', space=smem, size = 0x4, offset = 0x4, fixed_abs, tag = 'smem constant byte address 0x4 - core index']
  #allocation1 [shape = 'u32[144,128]{1,0:T(1,128)}', space=vmem, size = 0x12000, scoped, tag = 'internal scratch']
  %s0 = inlined_call_operand.vmem [shape: f32[8,24], index: 0, kind: input, shape index: {}]
  %s1 = inlined_call_operand.vmem [shape: s32[8,1], index: 1, kind: input, shape index: {}]
  %s2 = inlined_call_operand.vmem [shape: bf16[64,32], index: 2, kind: input, shape index: {}]
  %s3 = inlined_call_operand.vmem [shape: bf16[32,16], index: 3, kind: input, shape index: {}]
  %s4 = inlined_call_operand.vmem [shape: f32[1,48], index: 4, kind: input, shape index: {}]
  %s5 = inlined_call_operand.vmem [shape: f32[4,8,8], index: 5, kind: input, shape index: {}]
  %s6 = inlined_call_operand.hbm [shape: f32[4,8,8], index: 6, kind: output, shape index: {}]
  %s7 = sld [smem:[#allocation0]]
  $region34: #{wpi_forward.1} parent=0
    _
  %s9 = ssub.s32 1, %s7
  %s10 = scalar_select 0, %s9, %s7
  $region1: #{wpi_forward.1} parent=0
    #allocation2 [shape = 'u8[16384]{0}', space=vmem, size = 0x4000, scoped, tag = 'output window, operand 0, single buffered']
    #allocation3 [shape = 's32[1]{0}', space=sflag, size = 0x4, scoped, tag = 'scoped memory for wpi_forward.1']
    %11 = vsyncpa [#allocation3], 0
    // Predicated region
    $region2: #{wpi_forward.1} parent=1 // pred_check
      _
    $region3: #{wpi_forward.1} parent=1 // pred_check_branch
      %13 = sbr.rel (0) target = $region5
    $region4: #{wpi_forward.1} parent=1 // pred_region
      _
    $region5: #{wpi_forward.1} parent=1 // pred_fallthru
      _
    // Predicated region
    $region6: #{wpi_forward.1} parent=1 // pred_check
      _
    $region7: #{wpi_forward.1} parent=1 // pred_check_branch
      %15 = sbr.rel (0) target = $region9
    $region8: #{wpi_forward.1} parent=1 // pred_region
      _
    $region9: #{wpi_forward.1} parent=1 // pred_fallthru
      _
    // Predicated region
    $region10: #{wpi_forward.1} parent=1 // pred_check
      _
    $region11: #{wpi_forward.1} parent=1 // pred_check_branch
      %17 = sbr.rel (0) target = $region13
    $region12: #{wpi_forward.1} parent=1 // pred_region
      _
    $region13: #{wpi_forward.1} parent=1 // pred_fallthru
      _
    // Predicated region
    $region14: #{wpi_forward.1} parent=1 // pred_check
      _
    $region15: #{wpi_forward.1} parent=1 // pred_check_branch
      %19 = sbr.rel (0) target = $region17
    $region16: #{wpi_forward.1} parent=1 // pred_region
      _
    $region17: #{wpi_forward.1} parent=1 // pred_fallthru
      _
    // Predicated region
    $region18: #{wpi_forward.1} parent=1 // pred_check
      _
    $region19: #{wpi_forward.1} parent=1 // pred_check_branch
      %21 = sbr.rel (0) target = $region21
    $region20: #{wpi_forward.1} parent=1 // pred_region
      _
    $region21: #{wpi_forward.1} parent=1 // pred_fallthru
      _
    // Predicated region
    $region22: #{wpi_forward.1} parent=1 // pred_check
      _
    $region23: #{wpi_forward.1} parent=1 // pred_check_branch
      %23 = sbr.rel (0) target = $region25
    $region24: #{wpi_forward.1} parent=1 // pred_region
      _
    $region25: #{wpi_forward.1} parent=1 // pred_fallthru
      _
    %v25 = vld [vmem:[%s0] sm:$0xff]
    %v26 = vpack.c.bf16 %v25, %v25
    %v27 = vld [vmem:[%s1] sm:$0xff]
    %v28 = vlaneseq
    %v29 = vand.u32 %v28, 127
    %30 = vset.pattern.permute.xlu0 0
    %31 = vperm.xlu0 %30, %v27
    %v32 = vpop.permute.xlu0 %31
    %vm33 = vcmp.eq.s32.totalorder %v29, %v32
    %v34 = vsel %vm33, 1, 0
    %v35 = vcvt.s32.f32 %v34
    %v36 = vpack.c.bf16 %v35, %v35
    %v37 = vld [vmem:[%s2] sm:$0xf]
    %v38 = vld [vmem:[%s2 + $0x4] sm:$0xf]
    %v39 = vld [vmem:[%s2 + $0x8] sm:$0xf]
    %v40 = vld [vmem:[%s2 + $0xc] sm:$0xf]
    %v41 = vld [vmem:[%s2 + $0x10] sm:$0xf]
    %v42 = vld [vmem:[%s2 + $0x14] sm:$0xf]
    %v43 = vld [vmem:[%s2 + $0x18] sm:$0xf]
    %v44 = vld [vmem:[%s2 + $0x1c] sm:$0xf]
    %vm45 = vcmask 64512
    %v47 = vsel %vm45, %v36, 0
    %vm49 = vcmask 1043456
    %v51 = vsel %vm49, %v40, 0
    %53 = vmatprep.subr.bf16.mxu0 0
    %54 = vmatpush1.bf16.msra.mxu0 %v51
    %55 = vmatprep.subr.bf16.mxu0 0
    %56 = vmatpush1.bf16.msra.mxu0 0
    %57 = vmatprep.subr.bf16.mxu0 0
    %58 = vmatpush1.bf16.msra.mxu0 0
    %59 = vmatprep.subr.bf16.mxu0 0
    %60 = vmatpush1.bf16.msra.mxu0 0
    %61 = vmatprep.subr.bf16.mxu0 0
    %62 = vmatpush1.bf16.msra.mxu0 0
    %63 = vmatprep.subr.bf16.mxu0 0
    %64 = vmatpush1.bf16.msra.mxu0 0
    %65 = vmatprep.subr.bf16.mxu0 0
    %66 = vmatpush1.bf16.msra.mxu0 0
    %67 = vmatprep.subr.bf16.mxu0 0
    %68 = vmatpush1.bf16.msra.mxu0 0
    %69 = vmatprep.subr.bf16.mxu0 0
    %70 = vmatpush1.bf16.msra.mxu0 0
    %71 = vmatprep.subr.bf16.mxu0 0
    %72 = vmatpush1.bf16.msra.mxu0 0
    %73 = vmatprep.subr.bf16.mxu0 0
    %74 = vmatpush1.bf16.msra.mxu0 0
    %75 = vmatprep.subr.bf16.mxu0 0
    %76 = vmatpush1.bf16.msra.mxu0 0
    %77 = vmatprep.subr.bf16.mxu0 0
    %78 = vmatpush1.bf16.msra.mxu0 0
    %79 = vmatprep.subr.bf16.mxu0 0
    %80 = vmatpush1.bf16.msra.mxu0 0
    %81 = vmatprep.subr.bf16.mxu0 0
    %82 = vmatpush1.bf16.msra.mxu0 0
    %83 = vmatprep.subr.bf16.mxu0 0
    %84 = vmatpush1.bf16.msra.mxu0 0
    %85 = vmatprep.mubr.bf16.mxu0 0
    %86 = vmatmul.mubr.bf16.gmra.mrb[0].mxu0 %v47
    %v87 = vpop.f32.mrb[0].mxu0
    %v88 = vadd.f32 0.0, %v87
    %v89 = vpop.f32.mrb[0].mxu0
    %v90 = vpop.f32.mrb[0].mxu0
    %v91 = vpop.f32.mrb[0].mxu0
    %92 = vdwg.mxu0
    %v96 = vunpack.c.l.b16 %v37
    %v97 = vunpack.c.l.b16 %v38
    %v98 = vunpack.c.l.b16 %v39
    %v99 = vpack.c.b16 %v97, %v96
    %v100 = vpack.c.b16 %v98, %v98
    %vm102 = vcmask 195584
    %v104 = vsel %vm102, %v26, 0
    %v107 = vsel %vm49, %v100, 0
    %109 = vmatprep.subr.bf16.mxu0 0
    %110 = vmatpush1.bf16.msra.mxu0 %v99
    %111 = vmatprep.subr.bf16.mxu0 0
    %112 = vmatpush1.bf16.msra.mxu0 %v107
    %113 = vmatprep.subr.bf16.mxu0 0
    %114 = vmatpush1.bf16.msra.mxu0 0
    %115 = vmatprep.subr.bf16.mxu0 0
    %116 = vmatpush1.bf16.msra.mxu0 0
    %117 = vmatprep.subr.bf16.mxu0 0
    %118 = vmatpush1.bf16.msra.mxu0 0
    %119 = vmatprep.subr.bf16.mxu0 0
    %120 = vmatpush1.bf16.msra.mxu0 0
    %121 = vmatprep.subr.bf16.mxu0 0
    %122 = vmatpush1.bf16.msra.mxu0 0
    %123 = vmatprep.subr.bf16.mxu0 0
    %124 = vmatpush1.bf16.msra.mxu0 0
    %125 = vmatprep.subr.bf16.mxu0 0
    %126 = vmatpush1.bf16.msra.mxu0 0
    %127 = vmatprep.subr.bf16.mxu0 0
    %128 = vmatpush1.bf16.msra.mxu0 0
    %129 = vmatprep.subr.bf16.mxu0 0
    %130 = vmatpush1.bf16.msra.mxu0 0
    %131 = vmatprep.subr.bf16.mxu0 0
    %132 = vmatpush1.bf16.msra.mxu0 0
    %133 = vmatprep.subr.bf16.mxu0 0
    %134 = vmatpush1.bf16.msra.mxu0 0
    %135 = vmatprep.subr.bf16.mxu0 0
    %136 = vmatpush1.bf16.msra.mxu0 0
    %137 = vmatprep.subr.bf16.mxu0 0
    %138 = vmatpush1.bf16.msra.mxu0 0
    %139 = vmatprep.subr.bf16.mxu0 0
    %140 = vmatpush1.bf16.msra.mxu0 0
    %141 = vmatprep.mubr.bf16.mxu0 0
    %142 = vmatmul.mubr.bf16.gmra.mrb[0].mxu0 %v104
    %v143 = vpop.f32.mrb[0].mxu0
    %v144 = vadd.f32 %v88, %v143
    %v145 = vpop.f32.mrb[0].mxu0
    %v146 = vpop.f32.mrb[0].mxu0
    %v147 = vpop.f32.mrb[0].mxu0
    %148 = vdwg.mxu0
    %v149 = vtanh.pop %v144
    %v150 = vld [vmem:[%s4] sm:$0x1]
    %v151 = vpack.c.bf16 %v149, %v149
    %v153 = vlaneseq
    %v154 = vshrl.u32 %v153, 7
    %v155 = vsub.s32 0, %v154
    %v156 = vrot.slane %v150, %v155
    %v162 = vunpack.c.l.b16 %v41
    %v163 = vunpack.c.l.b16 %v42
    %v164 = vunpack.c.l.b16 %v43
    %v165 = vunpack.c.l.b16 %v44
    %v166 = vpack.c.b16 %v163, %v162
    %v167 = vpack.c.b16 %v165, %v164
    %vm170 = vcmask 261120
    %v172 = vsel %vm170, %v151, 0
    %174 = vmatprep.subr.bf16.mxu0 0
    %175 = vmatpush1.bf16.msra.mxu0 %v166
    %176 = vmatprep.subr.bf16.mxu0 0
    %177 = vmatpush1.bf16.msra.mxu0 %v167
    %178 = vmatprep.subr.bf16.mxu0 0
    %179 = vmatpush1.bf16.msra.mxu0 0
    %180 = vmatprep.subr.bf16.mxu0 0
    %181 = vmatpush1.bf16.msra.mxu0 0
    %182 = vmatprep.subr.bf16.mxu0 0
    %183 = vmatpush1.bf16.msra.mxu0 0
    %184 = vmatprep.subr.bf16.mxu0 0
    %185 = vmatpush1.bf16.msra.mxu0 0
    %186 = vmatprep.subr.bf16.mxu0 0
    %187 = vmatpush1.bf16.msra.mxu0 0
    %188 = vmatprep.subr.bf16.mxu0 0
    %189 = vmatpush1.bf16.msra.mxu0 0
    %190 = vmatprep.subr.bf16.mxu0 0
    %191 = vmatpush1.bf16.msra.mxu0 0
    %192 = vmatprep.subr.bf16.mxu0 0
    %193 = vmatpush1.bf16.msra.mxu0 0
    %194 = vmatprep.subr.bf16.mxu0 0
    %195 = vmatpush1.bf16.msra.mxu0 0
    %196 = vmatprep.subr.bf16.mxu0 0
    %197 = vmatpush1.bf16.msra.mxu0 0
    %198 = vmatprep.subr.bf16.mxu0 0
    %199 = vmatpush1.bf16.msra.mxu0 0
    %200 = vmatprep.subr.bf16.mxu0 0
    %201 = vmatpush1.bf16.msra.mxu0 0
    %202 = vmatprep.subr.bf16.mxu0 0
    %203 = vmatpush1.bf16.msra.mxu0 0
    %204 = vmatprep.subr.bf16.mxu0 0
    %205 = vmatpush1.bf16.msra.mxu0 0
    %206 = vmatprep.mubr.bf16.mxu0 0
    %207 = vmatmul.mubr.bf16.gmra.mrb[0].mxu0 %v172
    %v208 = vpop.f32.mrb[0].mxu0
    %v209 = vadd.f32 %v156, %v208
    %v210 = vpop.f32.mrb[0].mxu0
    %v211 = vpop.f32.mrb[0].mxu0
    %v212 = vpop.f32.mrb[0].mxu0
    %213 = vdwg.mxu0
    %v214 = vtanh.pop %v209
    %v215 = vpack.c.bf16 %v214, %v214
    %v216 = vld [vmem:[%s3] sm:$0xf]
    %v217 = vld [vmem:[%s3 + $0x4] sm:$0xf]
    %v218 = vld [vmem:[%s3 + $0x8] sm:$0xf]
    %v219 = vld [vmem:[%s3 + $0xc] sm:$0xf]
    %v224 = vunpack.c.l.b16 %v216
    %v225 = vunpack.c.l.b16 %v217
    %v226 = vunpack.c.l.b16 %v218
    %v227 = vunpack.c.l.b16 %v219
    %v228 = vpack.c.b16 %v225, %v224
    %v229 = vpack.c.b16 %v227, %v226
    %232 = vrot.lane.b32.xlu0 %v156, 96
    %v233 = vpop.permute.xlu0 %232
    %v236 = vsel %vm170, %v215, 0
    %238 = vmatprep.subr.bf16.mxu0 0
    %239 = vmatpush1.bf16.msra.mxu0 %v228
    %240 = vmatprep.subr.bf16.mxu0 0
    %241 = vmatpush1.bf16.msra.mxu0 %v229
    %242 = vmatprep.subr.bf16.mxu0 0
    %243 = vmatpush1.bf16.msra.mxu0 0
    %244 = vmatprep.subr.bf16.mxu0 0
    %245 = vmatpush1.bf16.msra.mxu0 0
    %246 = vmatprep.subr.bf16.mxu0 0
    %247 = vmatpush1.bf16.msra.mxu0 0
    %248 = vmatprep.subr.bf16.mxu0 0
    %249 = vmatpush1.bf16.msra.mxu0 0
    %250 = vmatprep.subr.bf16.mxu0 0
    %251 = vmatpush1.bf16.msra.mxu0 0
    %252 = vmatprep.subr.bf16.mxu0 0
    %253 = vmatpush1.bf16.msra.mxu0 0
    %254 = vmatprep.subr.bf16.mxu0 0
    %255 = vmatpush1.bf16.msra.mxu0 0
    %256 = vmatprep.subr.bf16.mxu0 0
    %257 = vmatpush1.bf16.msra.mxu0 0
    %258 = vmatprep.subr.bf16.mxu0 0
    %259 = vmatpush1.bf16.msra.mxu0 0
    %260 = vmatprep.subr.bf16.mxu0 0
    %261 = vmatpush1.bf16.msra.mxu0 0
    %262 = vmatprep.subr.bf16.mxu0 0
    %263 = vmatpush1.bf16.msra.mxu0 0
    %264 = vmatprep.subr.bf16.mxu0 0
    %265 = vmatpush1.bf16.msra.mxu0 0
    %266 = vmatprep.subr.bf16.mxu0 0
    %267 = vmatpush1.bf16.msra.mxu0 0
    %268 = vmatprep.subr.bf16.mxu0 0
    %269 = vmatpush1.bf16.msra.mxu0 0
    %270 = vmatprep.mubr.bf16.mxu0 0
    %271 = vmatmul.mubr.bf16.gmra.mrb[0].mxu0 %v236
    %v272 = vpop.f32.mrb[0].mxu0
    %v273 = vadd.f32 %v233, %v272
    %v274 = vpop.f32.mrb[0].mxu0
    %v275 = vpop.f32.mrb[0].mxu0
    %v276 = vpop.f32.mrb[0].mxu0
    %277 = vdwg.mxu0
    %v278 = vmul.f32 %v273, 0.5
    %v279 = vmul.f32 %v278, 1.442695
    %v280 = vpow.pop %v279
    %v281 = vld [vmem:[%s5] sm:$0xff]
    %v282 = vld [vmem:[%s5 + $0x8] sm:$0xff]
    %v283 = vld [vmem:[%s5 + $0x10] sm:$0xff]
    %v284 = vld [vmem:[%s5 + $0x18] sm:$0xff]
    %289 = vrot.lane.b32.xlu0 %v281, 8
    %v290 = vpop.permute.xlu0 %289
    %291 = vrot.lane.b32.xlu0 %v282, 8
    %v292 = vpop.permute.xlu0 %291
    %293 = vrot.lane.b32.xlu0 %v283, 8
    %v294 = vpop.permute.xlu0 %293
    %295 = vrot.lane.b32.xlu0 %v284, 8
    %v296 = vpop.permute.xlu0 %295
    %v301 = vmul.f32 %v280, %v290
    %v302 = vmul.f32 %v280, %v292
    %v303 = vmul.f32 %v280, %v294
    %v304 = vmul.f32 %v280, %v296
    %309 = vrot.lane.b32.xlu0 %v301, 120
    %v310 = vpop.permute.xlu0 %309
    %311 = vrot.lane.b32.xlu0 %v302, 120
    %v312 = vpop.permute.xlu0 %311
    %313 = vrot.lane.b32.xlu0 %v303, 120
    %v314 = vpop.permute.xlu0 %313
    %315 = vrot.lane.b32.xlu0 %v304, 120
    %v316 = vpop.permute.xlu0 %315
    %v321 = vadd.f32 %v273, %v310
    %v322 = vadd.f32 %v273, %v312
    %v323 = vadd.f32 %v273, %v314
    %v324 = vadd.f32 %v273, %v316
    %v325 = vxor.u32 %v321, 2147483648
    %v326 = vxor.u32 %v322, 2147483648
    %v327 = vxor.u32 %v323, 2147483648
    %v328 = vxor.u32 %v324, 2147483648
    %v329 = vmul.f32 %v325, 1.442695
    %v330 = vpow.pop %v329
    %v331 = vmul.f32 %v326, 1.442695
    %v332 = vpow.pop %v331
    %v333 = vmul.f32 %v327, 1.442695
    %v334 = vpow.pop %v333
    %v335 = vmul.f32 %v328, 1.442695
    %v336 = vpow.pop %v335
    %v337 = vadd.f32 %v330, 1.0
    %v338 = vadd.f32 %v332, 1.0
    %v339 = vadd.f32 %v334, 1.0
    %v340 = vadd.f32 %v336, 1.0
    %v341 = vrcp.pop %v337
    %v342 = vmul.f32 1.0, %v341
    %v343 = vrcp.pop %v338
    %v344 = vmul.f32 1.0, %v343
    %v345 = vrcp.pop %v339
    %v346 = vmul.f32 1.0, %v345
    %v347 = vrcp.pop %v340
    %v348 = vmul.f32 1.0, %v347
    %349 = vst.msk [vmem:[#allocation2] sm:$0xff] %vm45, %v342
    %350 = vst.msk [vmem:[#allocation2 + $0x8] sm:$0xff] %vm45, %v344
    %351 = vst.msk [vmem:[#allocation2 + $0x10] sm:$0xff] %vm45, %v346
    %352 = vst.msk [vmem:[#allocation2 + $0x18] sm:$0xff] %vm45, %v348
    // Predicated region
    $region26: #{wpi_forward.1} parent=1 // pred_check
      _
    $region27: #{wpi_forward.1} parent=1 // pred_check_branch
      %354 = sbr.rel (0) target = $region29
    $region28: #{wpi_forward.1} parent=1 // pred_region
      %s356 = ssub.s32 512, 512
      %357 = vsyncadd [#allocation3], %s356
      %s358 = sshll.u32 [#allocation2], 4
      %s359 = int_to_ptr.vmem [resolvable:$true] %s358
      %364 = dma.vmem_to_hbm [thread:$0]  %s359, 512, %s6, [#allocation3], 128, 128, 8
    $region29: #{wpi_forward.1} parent=1 // pred_fallthru
      _
    // Predicated region
    $region30: #{wpi_forward.1} parent=1 // pred_check
      _
    $region31: #{wpi_forward.1} parent=1 // pred_check_branch
      %366 = sbr.rel (0) target = $region33
    $region32: #{wpi_forward.1} parent=1 // pred_region
      %367 = dma.done [#allocation3], 512
    $region33: #{wpi_forward.1} parent=1 // pred_fallthru
      _
    %368 = vsyncpa [#allocation3], 1

</llo_original>
